<compile_context>
chip_gen: v6e
topology: v6e:2x2x1
jax: 0.10.0
libtpu: 0.0.40
codegen_flags: <defaults>
</compile_context>

<pallas_src>
import functools

import jax
import jax.numpy as jnp
from jax import lax
from jax.experimental import pallas as pl
from jax.experimental.pallas import tpu as pltpu


def _lsr_kernel(logit_ref, lab_ref, loss_ref, acc_ref, *,
                n_classes: int, eps: float, batch: int, tile_b: int):
    i = pl.program_id(0)

    @pl.when(i == 0)
    def _init():
        acc_ref[...] = jnp.zeros_like(acc_ref)

    x = logit_ref[...]                                   # (TB, C), original dtype
    labels = lab_ref[...]                                # (1, TB) int32

    # Lane-dense relayout on the MXU: xt[c, j] = x[j, c].  NT contraction with a
    # CxC identity is exact (1.0*x + 0.0*x, f32 accumulate) and keeps the VPU /
    # EUP work on full 128-lane vregs with samples on the lane axis.
    rows = lax.broadcasted_iota(jnp.int32, (n_classes, n_classes), 0)
    cols = lax.broadcasted_iota(jnp.int32, (n_classes, n_classes), 1)
    eye = (rows == cols).astype(x.dtype)                 # (C, C)
    xt = lax.dot_general(eye, x, (((1,), (1,)), ((), ())),
                         preferred_element_type=jnp.float32)     # (C, TB) f32

    # Numerically stable logsumexp over classes (class axis = sublanes).
    m = jnp.max(xt, axis=0, keepdims=True)               # (1, TB)
    p = jnp.exp(xt - m)                                  # (C, TB) (EUP)
    lse = m + jnp.log(jnp.sum(p, axis=0, keepdims=True)) # (1, TB)

    # Smoothed CE per sample: loss_i = logsumexp_c(x) - sum_c q_c * x_c with
    # q = 1-eps on the true class and eps/(C-1) elsewhere (sum_c q_c == 1).
    eps_off = eps / max(n_classes - 1, 1)
    cls = lax.broadcasted_iota(jnp.int32, (n_classes, 1), 0)      # (C, 1) column
    q = jnp.where(cls == labels, jnp.float32(1.0 - eps),
                  jnp.float32(eps_off))                  # (C, TB) via broadcast
    wsum = jnp.sum(q * xt, axis=0, keepdims=True)        # (1, TB)
    per_sample = lse - wsum                              # (1, TB)

    # Mask tail / padded columns.  Garbage columns (partial edge block) may hold
    # NaN/Inf, but nothing crosses columns before this select.
    col = lax.broadcasted_iota(jnp.int32, (1, tile_b), 1) + i * tile_b
    per_sample = jnp.where(col < batch, per_sample, 0.0)

    # Lane-wise accumulation: plain VPU adds every step; the cross-lane reduce
    # and SMEM scalar store only happen in the finalize branch.
    acc_ref[...] += per_sample

    @pl.when(i == pl.num_programs(0) - 1)
    def _finalize():
        loss_ref[0, 0] = jnp.sum(acc_ref[...]) / jnp.float32(batch)


def _round_up(x: int, m: int) -> int:
    return ((x + m - 1) // m) * m


def _pick_tile(itemsize: int) -> int:
    # The (tile_b, C) logits block lane-pads to 128 lanes in VMEM, so budget
    # 2 * 128 * itemsize B/sample for the double-buffered input, plus the labels
    # row and the f32 intermediates / accumulator.  Stay well under the 32 MiB
    # default scoped VMEM on v6e/v7x (and under v7x's 64 MiB physical);
    # vmem_limit_bytes is raised so v5e's 16 MiB default does not cap it.
    per_sample = 2 * 128 * itemsize + 2 * 32 + 96
    budget = 20 << 20
    tile = (budget // per_sample) // 128 * 128
    return int(max(128, min(tile, 64 * 1024)))


def lsr_loss(outputs: jax.Array, labels: jax.Array,
             n_classes: int = 7, eps: float = 0.1,
             tile_b: int | None = None) -> jax.Array:
    """Label-smoothing cross-entropy matching the PyTorch LSR.forward."""
    assert outputs.ndim == 2 and labels.ndim == 1
    assert outputs.shape[0] == labels.shape[0]
    assert outputs.shape[1] == n_classes
    b, c = outputs.shape

    itemsize = jnp.dtype(outputs.dtype).itemsize
    if tile_b is None:
        tile_b = _pick_tile(itemsize)
    b_pad = _round_up(b, 128)
    tile = min(_round_up(tile_b, 128), b_pad)

    logits = outputs
    labels_i32 = labels.astype(jnp.int32)
    if b < tile:
        # Single-block case: tile == round_up(b, 128), so this pads by at most
        # 127 rows (negligible).  Large batches take the unpadded path; partial
        # edge blocks there are handled by the in-kernel mask.
        logits = jnp.pad(logits, ((0, tile - b), (0, 0)))
        labels_i32 = jnp.pad(labels_i32, (0, tile - b))
    rows = logits.shape[0]
    labels_row = labels_i32.reshape(1, rows)
    n_blocks = pl.cdiv(rows, tile)

    kernel = functools.partial(_lsr_kernel, n_classes=c, eps=float(eps),
                               batch=b, tile_b=tile)

    # TODO(synk): v7x — leading CORE_PARALLEL grid axis (size 2) with per-core
    # accumulators/outputs to use both TensorCores; kept single-core for
    # portability across v5e/v6e.
    loss = pl.pallas_call(
        kernel,
        out_shape=jax.ShapeDtypeStruct((1, 1), jnp.float32),
        grid=(n_blocks,),
        in_specs=[
            pl.BlockSpec((tile, c), lambda i: (i, 0)),      # logits (TB, C)
            pl.BlockSpec((1, tile), lambda i: (0, i)),      # labels (1, TB)
        ],
        out_specs=pl.BlockSpec((1, 1), lambda i: (0, 0),
                               memory_space=pltpu.SMEM),
        scratch_shapes=[pltpu.VMEM((1, tile), jnp.float32)],
        compiler_params=pltpu.CompilerParams(
            dimension_semantics=("arbitrary",),
            vmem_limit_bytes=40 << 20),
    )(logits, labels_row)

    return loss[0, 0]


def _reference_lsr(outputs, labels, n_classes=7, eps=0.1):
    """Pure-JAX reference mirroring the PyTorch code, for verification."""
    one_hot = jax.nn.one_hot(labels, n_classes, dtype=jnp.float32)
    smooth = jnp.where(one_hot > 0, 1.0 - eps, eps / (n_classes - 1))
    logp = jax.nn.log_softmax(outputs.astype(jnp.float32), axis=1)
    return jnp.mean(jnp.sum(-smooth * logp, axis=1))


if __name__ == "__main__":
    key = jax.random.PRNGKey(0)
    k1, k2, k3, k4, k5, k6 = jax.random.split(key, 6)

    # Case 1: tiny batch, f32 (typical usage of the original module).
    B, C = 8, 7
    outputs = jax.random.normal(k1, (B, C), dtype=jnp.float32)
    labels = jax.random.randint(k2, (B,), 0, C, dtype=jnp.int32)
    loss = jax.block_until_ready(lsr_loss(outputs, labels, n_classes=C, eps=0.1))
    ref = _reference_lsr(outputs, labels, n_classes=C, eps=0.1)
    assert jnp.allclose(loss, ref, rtol=1e-5, atol=1e-5), (loss, ref)

    # Case 2: bf16 logits, batch not a multiple of 128 (exercises the in-kernel
    # MXU upcast/relayout and the single padded block path).
    B2 = 200
    outputs2 = jax.random.normal(k3, (B2, C), dtype=jnp.bfloat16)
    labels2 = jax.random.randint(k4, (B2,), 0, C, dtype=jnp.int32)
    loss2 = jax.block_until_ready(lsr_loss(outputs2, labels2, n_classes=C, eps=0.1))
    ref2 = _reference_lsr(outputs2, labels2, n_classes=C, eps=0.1)
    assert jnp.allclose(loss2, ref2, rtol=1e-3, atol=1e-3), (loss2, ref2)

    # Case 3: multi-block grid with a partial (masked) edge block and the
    # persistent lane-wise accumulator across steps.
    B3 = 333
    outputs3 = jax.random.normal(k5, (B3, C), dtype=jnp.float32)
    labels3 = jax.random.randint(k6, (B3,), 0, C, dtype=jnp.int32)
    loss3 = jax.block_until_ready(
        lsr_loss(outputs3, labels3, n_classes=C, eps=0.1, tile_b=128))
    ref3 = _reference_lsr(outputs3, labels3, n_classes=C, eps=0.1)
    assert jnp.allclose(loss3, ref3, rtol=1e-5, atol=1e-5), (loss3, ref3)

    print("KERNEL_OK")
</pallas_src>

<mosaic_0001>
module attributes {stable_mosaic.version = 11 : i64} {
  func.func @_lsr_kernel(%arg0: i32, %arg1: memref<128x7xf32, #tpu.memory_space<vmem>>, %arg2: memref<1x128xi32, #tpu.memory_space<vmem>>, %arg3: memref<1x1xf32, #tpu.memory_space<smem>>, %arg4: memref<1x128xf32, #tpu.memory_space<vmem>>) attributes {dimension_semantics = [#tpu.dimension_semantics<arbitrary>], iteration_bounds = array<i64: 1>, scalar_prefetch = 0 : i64, scratch_operands = 1 : i64, tpu.core_type = #tpu.core_type<tc>, window_params = [{transform_indices = @transform_0, window_bounds = array<i64: 128, 7>}, {transform_indices = @transform_1, window_bounds = array<i64: 1, 128>}, {transform_indices = @transform_2, window_bounds = array<i64: 1, 1>}]} {
    %c0_i32 = arith.constant 0 : i32
    %0 = arith.cmpi eq, %arg0, %c0_i32 : i32
    %1 = arith.extui %0 : i1 to i32
    %c0_i32_0 = arith.constant 0 : i32
    %2 = arith.cmpi ne, %1, %c0_i32_0 : i32
    scf.if %2 {
      %cst_16 = arith.constant 0.000000e+00 : f32
      %45 = vector.broadcast %cst_16 : f32 to vector<1x128xf32>
      %c0_17 = arith.constant 0 : index
      %c0_18 = arith.constant 0 : index
      %46 = vector.load %arg4[%c0_17, %c0_18] : memref<1x128xf32, #tpu.memory_space<vmem>>, vector<1x128xf32>
      tpu.vector_store %arg4[%c0_17, %c0_18], %45 {strides = array<i32>} : memref<1x128xf32, #tpu.memory_space<vmem>>, vector<1x128xf32>,
    } else {
    }
    %c0 = arith.constant 0 : index
    %c0_1 = arith.constant 0 : index
    %3 = vector.load %arg1[%c0, %c0_1] : memref<128x7xf32, #tpu.memory_space<vmem>>, vector<128x7xf32>
    %c0_2 = arith.constant 0 : index
    %c0_3 = arith.constant 0 : index
    %4 = vector.load %arg2[%c0_2, %c0_3] : memref<1x128xi32, #tpu.memory_space<vmem>>, vector<1x128xi32>
    %5 = tpu.iota {dimensions = array<i32: 0>} : vector<7x7xi32>
    %6 = tpu.iota {dimensions = array<i32: 1>} : vector<7x7xi32>
    %7 = arith.cmpi eq, %5, %6 : vector<7x7xi32>
    %8 = arith.extui %7 : vector<7x7xi1> to vector<7x7xi32>
    %9 = arith.sitofp %8 : vector<7x7xi32> to vector<7x7xf32>
    %cst = arith.constant dense<0.000000e+00> : vector<7x128xf32>
    %10 = tpu.matmul %9, %3, %cst {dimension_numbers = #tpu.dot_dimension_numbers<[1], [1], [0], [0], [0, 0, 1, 0], [], []>} : vector<7x7xf32>, vector<128x7xf32>, vector<7x128xf32> -> vector<7x128xf32>
    %cst_4 = arith.constant dense<0xFF800000> : vector<128xf32>
    %11 = vector.multi_reduction <maximumf>, %10, %cst_4 [0] : vector<7x128xf32> to vector<128xf32>
    %12 = vector.shape_cast %11 : vector<128xf32> to vector<1x128xf32>
    %13 = vector.broadcast %12 : vector<1x128xf32> to vector<7x128xf32>
    %14 = arith.subf %10, %13 : vector<7x128xf32>
    %15 = math.exp %14 : vector<7x128xf32>
    %cst_5 = arith.constant dense<0.000000e+00> : vector<128xf32>
    %16 = vector.multi_reduction <add>, %15, %cst_5 [0] : vector<7x128xf32> to vector<128xf32>
    %17 = vector.shape_cast %16 : vector<128xf32> to vector<1x128xf32>
    %18 = math.log %17 : vector<1x128xf32>
    %19 = arith.addf %12, %18 : vector<1x128xf32>
    %20 = tpu.iota {dimensions = array<i32: 0>} : vector<7x1xi32>
    %21 = vector.broadcast %20 : vector<7x1xi32> to vector<7x128xi32>
    %22 = vector.broadcast %4 : vector<1x128xi32> to vector<7x128xi32>
    %23 = arith.cmpi eq, %21, %22 : vector<7x128xi32>
    %cst_6 = arith.constant 0.899999976 : f32
    %cst_7 = arith.constant 0.0166666675 : f32
    %24 = vector.broadcast %cst_6 : f32 to vector<7x128xf32>
    %25 = vector.broadcast %cst_7 : f32 to vector<7x128xf32>
    %26 = arith.select %23, %24, %25 : vector<7x128xi1>, vector<7x128xf32>
    %27 = arith.mulf %26, %10 : vector<7x128xf32>
    %cst_8 = arith.constant dense<0.000000e+00> : vector<128xf32>
    %28 = vector.multi_reduction <add>, %27, %cst_8 [0] : vector<7x128xf32> to vector<128xf32>
    %29 = vector.shape_cast %28 : vector<128xf32> to vector<1x128xf32>
    %30 = arith.subf %19, %29 : vector<1x128xf32>
    %31 = tpu.iota {dimensions = array<i32: 1>} : vector<1x128xi32>
    %c128_i32 = arith.constant 128 : i32
    %32 = arith.muli %arg0, %c128_i32 : i32
    %33 = vector.broadcast %32 : i32 to vector<1x128xi32>
    %34 = arith.addi %31, %33 : vector<1x128xi32>
    %c8_i32 = arith.constant 8 : i32
    %35 = vector.broadcast %c8_i32 : i32 to vector<1x128xi32>
    %36 = arith.cmpi slt, %34, %35 : vector<1x128xi32>
    %cst_9 = arith.constant 0.000000e+00 : f32
    %37 = vector.broadcast %cst_9 : f32 to vector<1x128xf32>
    %38 = arith.select %36, %30, %37 : vector<1x128xi1>, vector<1x128xf32>
    %c0_10 = arith.constant 0 : index
    %c0_11 = arith.constant 0 : index
    %39 = vector.load %arg4[%c0_10, %c0_11] : memref<1x128xf32, #tpu.memory_space<vmem>>, vector<1x128xf32>
    %40 = arith.addf %39, %38 : vector<1x128xf32>
    %c0_12 = arith.constant 0 : index
    %c0_13 = arith.constant 0 : index
    %41 = vector.load %arg4[%c0_12, %c0_13] : memref<1x128xf32, #tpu.memory_space<vmem>>, vector<1x128xf32>
    tpu.vector_store %arg4[%c0_12, %c0_13], %40 {strides = array<i32>} : memref<1x128xf32, #tpu.memory_space<vmem>>, vector<1x128xf32>,
    %c0_i32_14 = arith.constant 0 : i32
    %42 = arith.cmpi eq, %arg0, %c0_i32_14 : i32
    %43 = arith.extui %42 : i1 to i32
    %c0_i32_15 = arith.constant 0 : i32
    %44 = arith.cmpi ne, %43, %c0_i32_15 : i32
    scf.if %44 {
      %c0_16 = arith.constant 0 : index
      %c0_17 = arith.constant 0 : index
      %45 = vector.load %arg4[%c0_16, %c0_17] : memref<1x128xf32, #tpu.memory_space<vmem>>, vector<1x128xf32>
      %46 = vector.shape_cast %45 : vector<1x128xf32> to vector<1x1x128xf32>
      %cst_18 = arith.constant dense<0.000000e+00> : vector<1xf32>
      %47 = vector.multi_reduction <add>, %46, %cst_18 [1, 2] : vector<1x1x128xf32> to vector<1xf32>
      %48 = vector.shape_cast %47 : vector<1xf32> to vector<1x1x1xf32>
      %49 = vector.extract %48[0, 0, 0] : f32 from vector<1x1x1xf32>
      %cst_19 = arith.constant 8.000000e+00 : f32
      %50 = arith.divf %49, %cst_19 : f32
      %c0_20 = arith.constant 0 : index
      %c0_21 = arith.constant 0 : index
      %51 = memref.load %arg3[%c0_20, %c0_21] : memref<1x1xf32, #tpu.memory_space<smem>>
      memref.store %50, %arg3[%c0_20, %c0_21] : memref<1x1xf32, #tpu.memory_space<smem>>
    } else {
    }
    return
  }
  func.func @transform_0(%arg0: i32) -> (i32, i32) {
    %c0_i32 = arith.constant 0 : i32
    %c0_i32_0 = arith.constant 0 : i32
    return %arg0, %c0_i32 : i32, i32
  }
  func.func @transform_1(%arg0: i32) -> (i32, i32) {
    %c0_i32 = arith.constant 0 : i32
    %c0_i32_0 = arith.constant 0 : i32
    return %c0_i32, %arg0 : i32, i32
  }
  func.func @transform_2(%arg0: i32) -> (i32, i32) {
    %c0_i32 = arith.constant 0 : i32
    %c0_i32_0 = arith.constant 0 : i32
    %c0_i32_1 = arith.constant 0 : i32
    return %c0_i32, %c0_i32_0 : i32, i32
  }
}

</mosaic_0001>

<llo_original>
// kernel: tpu_custom_call.1
$region0: #{tpu_custom_call.1}
  #allocation0 [shape = 'u32[]', space=smem, size = 0x4, offset = 0x4, fixed_abs, tag = 'smem constant byte address 0x4 - core index']
  #allocation1 [shape = 'u32[144,128]{1,0:T(1,128)}', space=vmem, size = 0x12000, scoped, tag = 'internal scratch']
  #allocation2 [shape = 'f32[1,128]{1,0:T(1,128)}', space=vmem, size = 0x200, scoped, tag = 'scratch operand']
  %s0 = inlined_call_operand.vmem [shape: f32[128,7], index: 0, kind: input, shape index: {}]
  %s1 = inlined_call_operand.vmem [shape: s32[1,128], index: 1, kind: input, shape index: {}]
  %s2 = inlined_call_operand.hbm [shape: f32[1,1], index: 2, kind: output, shape index: {}]
  %s3 = sld [smem:[#allocation0]]
  $region26: #{tpu_custom_call.1} parent=0
    _
  %s5 = ssub.s32 1, %s3
  %s6 = scalar_select 0, %s5, %s3
  $region1: #{tpu_custom_call.1} parent=0
    #allocation3 [shape = 'u8[512]{0}', space=smem, size = 0x200, scoped, tag = 'output window, operand 0, single buffered']
    #allocation4 [shape = 's32[1]{0}', space=sflag, size = 0x4, scoped, tag = 'scoped memory for tpu_custom_call.1']
    %7 = vsyncpa [#allocation4], 0
    // Predicated region
    $region2: #{tpu_custom_call.1} parent=1 // pred_check
      _
    $region3: #{tpu_custom_call.1} parent=1 // pred_check_branch
      %9 = sbr.rel (0) target = $region5
    $region4: #{tpu_custom_call.1} parent=1 // pred_region
      _
    $region5: #{tpu_custom_call.1} parent=1 // pred_fallthru
      _
    // Predicated region
    $region6: #{tpu_custom_call.1} parent=1 // pred_check
      _
    $region7: #{tpu_custom_call.1} parent=1 // pred_check_branch
      %11 = sbr.rel (0) target = $region9
    $region8: #{tpu_custom_call.1} parent=1 // pred_region
      _
    $region9: #{tpu_custom_call.1} parent=1 // pred_fallthru
      _
    %p12 = scmp.eq.s32.totalorder 0, 0
    // Predicated region
    $region10: #{tpu_custom_call.1} parent=1 // pred_check
      %p13 = pneg %p12
    $region11: #{tpu_custom_call.1} parent=1 // pred_check_branch
      %15 = sbr.rel (%p13) target = $region13
    $region12: #{tpu_custom_call.1} parent=1 // pred_region
      %16 = vst [vmem:[#allocation2] sm:$0x1] 0.0
    $region13: #{tpu_custom_call.1} parent=1 // pred_fallthru
      _
    %v17 = vld [vmem:[%s0] sm:$0xff]
    %v18 = vld [vmem:[%s0 + $0x8] sm:$0xff]
    %v19 = vld [vmem:[%s0 + $0x10] sm:$0xff]
    %v20 = vld [vmem:[%s0 + $0x18] sm:$0xff]
    %v21 = vld [vmem:[%s0 + $0x20] sm:$0xff]
    %v22 = vld [vmem:[%s0 + $0x28] sm:$0xff]
    %v23 = vld [vmem:[%s0 + $0x30] sm:$0xff]
    %v24 = vld [vmem:[%s0 + $0x38] sm:$0xff]
    %v25 = vld [vmem:[%s0 + $0x40] sm:$0xff]
    %v26 = vld [vmem:[%s0 + $0x48] sm:$0xff]
    %v27 = vld [vmem:[%s0 + $0x50] sm:$0xff]
    %v28 = vld [vmem:[%s0 + $0x58] sm:$0xff]
    %v29 = vld [vmem:[%s0 + $0x60] sm:$0xff]
    %v30 = vld [vmem:[%s0 + $0x68] sm:$0xff]
    %v31 = vld [vmem:[%s0 + $0x70] sm:$0xff]
    %v32 = vld [vmem:[%s0 + $0x78] sm:$0xff]
    %v33 = vld [vmem:[%s1] sm:$0x1]
    %v34 = vlaneseq
    %v35 = vshrl.u32 %v34, 7
    %v36 = vlaneseq
    %v37 = vand.u32 %v36, 127
    %vm38 = vcmp.eq.s32.totalorder %v35, %v37
    %v39 = vsel %vm38, 1, 0
    %v40 = vcvt.s32.f32 %v39
    %vm41 = vcmask 56320
    %v43 = vsel %vm41, %v40, 0
    %v46 = vsel %vm41, %v17, 0
    %v49 = vsel %vm41, %v18, 0
    %v52 = vsel %vm41, %v19, 0
    %v55 = vsel %vm41, %v20, 0
    %v58 = vsel %vm41, %v21, 0
    %v61 = vsel %vm41, %v22, 0
    %v64 = vsel %vm41, %v23, 0
    %v67 = vsel %vm41, %v24, 0
    %v70 = vsel %vm41, %v25, 0
    %v73 = vsel %vm41, %v26, 0
    %v76 = vsel %vm41, %v27, 0
    %v79 = vsel %vm41, %v28, 0
    %v82 = vsel %vm41, %v29, 0
    %v85 = vsel %vm41, %v30, 0
    %v88 = vsel %vm41, %v31, 0
    %v91 = vsel %vm41, %v32, 0
    %93 = vmatprep.subr.mxu0 0.0
    %94 = vmatpush1.xpose.msra.mxu0 %v91
    %95 = vmatprep.subr.mxu0 0.0
    %96 = vmatpush1.xpose.msra.mxu0 %v88
    %97 = vmatprep.subr.mxu0 0.0
    %98 = vmatpush1.xpose.msra.mxu0 %v85
    %99 = vmatprep.subr.mxu0 0.0
    %100 = vmatpush1.xpose.msra.mxu0 %v82
    %101 = vmatprep.subr.mxu0 0.0
    %102 = vmatpush1.xpose.msra.mxu0 %v79
    %103 = vmatprep.subr.mxu0 0.0
    %104 = vmatpush1.xpose.msra.mxu0 %v76
    %105 = vmatprep.subr.mxu0 0.0
    %106 = vmatpush1.xpose.msra.mxu0 %v73
    %107 = vmatprep.subr.mxu0 0.0
    %108 = vmatpush1.xpose.msra.mxu0 %v70
    %109 = vmatprep.subr.mxu0 0.0
    %110 = vmatpush1.xpose.msra.mxu0 %v67
    %111 = vmatprep.subr.mxu0 0.0
    %112 = vmatpush1.xpose.msra.mxu0 %v64
    %113 = vmatprep.subr.mxu0 0.0
    %114 = vmatpush1.xpose.msra.mxu0 %v61
    %115 = vmatprep.subr.mxu0 0.0
    %116 = vmatpush1.xpose.msra.mxu0 %v58
    %117 = vmatprep.subr.mxu0 0.0
    %118 = vmatpush1.xpose.msra.mxu0 %v55
    %119 = vmatprep.subr.mxu0 0.0
    %120 = vmatpush1.xpose.msra.mxu0 %v52
    %121 = vmatprep.subr.mxu0 0.0
    %122 = vmatpush1.xpose.msra.mxu0 %v49
    %123 = vmatprep.subr.mxu0 0.0
    %124 = vmatpush1.xpose.msra.mxu0 %v46
    %125 = vmatprep.subr.mxu0 0.0
    %126 = vmatpush2.xpose.msra.mxu0 0.0
    %127 = vmatprep.subr.mxu0 0.0
    %128 = vmatpush2.xpose.msra.mxu0 0.0
    %129 = vmatprep.subr.mxu0 0.0
    %130 = vmatpush2.xpose.msra.mxu0 0.0
    %131 = vmatprep.subr.mxu0 0.0
    %132 = vmatpush2.xpose.msra.mxu0 0.0
    %133 = vmatprep.subr.mxu0 0.0
    %134 = vmatpush2.xpose.msra.mxu0 0.0
    %135 = vmatprep.subr.mxu0 0.0
    %136 = vmatpush2.xpose.msra.mxu0 0.0
    %137 = vmatprep.subr.mxu0 0.0
    %138 = vmatpush2.xpose.msra.mxu0 0.0
    %139 = vmatprep.subr.mxu0 0.0
    %140 = vmatpush2.xpose.msra.mxu0 0.0
    %141 = vmatprep.subr.mxu0 0.0
    %142 = vmatpush2.xpose.msra.mxu0 0.0
    %143 = vmatprep.subr.mxu0 0.0
    %144 = vmatpush2.xpose.msra.mxu0 0.0
    %145 = vmatprep.subr.mxu0 0.0
    %146 = vmatpush2.xpose.msra.mxu0 0.0
    %147 = vmatprep.subr.mxu0 0.0
    %148 = vmatpush2.xpose.msra.mxu0 0.0
    %149 = vmatprep.subr.mxu0 0.0
    %150 = vmatpush2.xpose.msra.mxu0 0.0
    %151 = vmatprep.subr.mxu0 0.0
    %152 = vmatpush2.xpose.msra.mxu0 0.0
    %153 = vmatprep.subr.mxu0 0.0
    %154 = vmatpush2.xpose.msra.mxu0 0.0
    %155 = vmatprep.subr.mxu0 0.0
    %156 = vmatpush2.xpose.msra.mxu0 0.0
    %157 = vmatprep.mubr.f32.mxu0 0.0
    %158 = vmatmul.mubr.f32.gmra.mxu0 %v43
    %v159 = vpop.f32.mrf.mxu0
    %v160 = vadd.f32 0.0, %v159
    %v161 = vpop.f32.mrf.mxu0
    %162 = vdwg.mxu0
    %vm163 = vcmask 1046528
    %v164 = vsel %vm163, %v160, -inf
    %v165 = vrot.slane %v164, 4
    %v166 = vmax.f32 %v164, %v165
    %v167 = vrot.slane %v166, 2
    %v168 = vmax.f32 %v166, %v167
    %v169 = vrot.slane %v168, 1
    %v170 = vmax.f32 %v168, %v169
    %v171 = vsub.f32 %v160, %v170
    %v172 = vmul.f32 %v171, 1.442695
    %v173 = vpow.pop %v172
    %v174 = vsel %vm163, %v173, 0.0
    %v175 = vrot.slane %v174, 4
    %v176 = vadd.f32 %v174, %v175
    %v177 = vrot.slane %v176, 2
    %v178 = vadd.f32 %v176, %v177
    %v179 = vrot.slane %v178, 1
    %v180 = vadd.f32 %v178, %v179
    %v181 = vlog2.pop %v180
    %v182 = vmul.f32 %v181, 0.6931472
    %v183 = vadd.f32 %v170, %v182
    %v184 = vlaneseq
    %v185 = vshrl.u32 %v184, 7
    %v186 = vsub.s32 0, %v185
    %v187 = vrot.slane %v33, %v186
    %vm188 = vcmp.eq.s32.totalorder %v35, %v187
    %v189 = vsel %vm188, 0.9, 0.016666668
    %v190 = vmul.f32 %v189, %v160
    %v191 = vsel %vm163, %v190, 0.0
    %v192 = vrot.slane %v191, 4
    %v193 = vadd.f32 %v191, %v192
    %v194 = vrot.slane %v193, 2
    %v195 = vadd.f32 %v193, %v194
    %v196 = vrot.slane %v195, 1
    %v197 = vadd.f32 %v195, %v196
    %v198 = vsub.f32 %v183, %v197
    %s199 = smul.u32 0, 128
    %v200 = vstv %s199
    %v201 = vadd.s32 %v37, %v200
    %vm202 = vcmp.lt.s32.totalorder %v201, 8
    %v203 = vsel %vm202, %v198, 0.0
    %v204 = vld [vmem:[#allocation2] sm:$0x1]
    %v205 = vadd.f32 %v204, %v203
    %206 = vst [vmem:[#allocation2] sm:$0x1] %v205
    // Predicated region
    $region14: #{tpu_custom_call.1} parent=1 // pred_check
      %p207 = pneg %p12
    $region15: #{tpu_custom_call.1} parent=1 // pred_check_branch
      %209 = sbr.rel (%p207) target = $region17
    $region16: #{tpu_custom_call.1} parent=1 // pred_region
      %v210 = vld [vmem:[#allocation2] sm:$0x1]
      %vm211 = vcmask 1040384
      %v212 = vsel %vm211, %v210, 0.0
      %213 = vadd.xlane.f32.xlu0 %v212
      %v214 = vpop.xlane.xlu0 %213
      %v215 = vrot.slane %v214, 4
      %v216 = vadd.f32 %v214, %v215
      %v217 = vrot.slane %v216, 2
      %v218 = vadd.f32 %v216, %v217
      %v219 = vrot.slane %v218, 1
      %v220 = vadd.f32 %v218, %v219
      %s221 = vtos %v220
      %v222 = vrcp.pop 8.0
      %s223 = vtos %v222
      %s224 = smul.f32 %s221, %s223
      %s225 = scalar_lea.smem [#allocation3], 0
      %226 = sst [smem:[%s225]] %s224
    $region17: #{tpu_custom_call.1} parent=1 // pred_fallthru
      _
    // Predicated region
    $region18: #{tpu_custom_call.1} parent=1 // pred_check
      _
    $region19: #{tpu_custom_call.1} parent=1 // pred_check_branch
      %228 = sbr.rel (0) target = $region21
    $region20: #{tpu_custom_call.1} parent=1 // pred_region
      %s230 = ssub.s32 16, 16
      %231 = vsyncadd [#allocation4], %s230
      %234 = dma.smem_to_hbm [#allocation3], 16, %s2, [#allocation4]
    $region21: #{tpu_custom_call.1} parent=1 // pred_fallthru
      _
    // Predicated region
    $region22: #{tpu_custom_call.1} parent=1 // pred_check
      _
    $region23: #{tpu_custom_call.1} parent=1 // pred_check_branch
      %236 = sbr.rel (0) target = $region25
    $region24: #{tpu_custom_call.1} parent=1 // pred_region
      %237 = dma.done [#allocation4], 16
    $region25: #{tpu_custom_call.1} parent=1 // pred_fallthru
      _
    %238 = sfence
    %239 = vsyncpa [#allocation4], 1

</llo_original>
